<compile_context>
chip_gen: v7x
topology: tpu7x:2x2x1
jax: 0.10.0
libtpu: 0.0.40
codegen_flags: <defaults>
</compile_context>

<pallas_src>
import jax
import jax.numpy as jnp
from jax.experimental import pallas as pl
from jax.experimental.pallas import tpu as pltpu

_CHANNELS = [(3, 32), (32, 64), (64, 128), (128, 128), (128, 256),
             (256, 256), (256, 512), (512, 512), (512, 512)]
_STRIDES = [1, 1, 1, 1, 2, 1, 1, 2, 1]
_VMEM_LIMIT = 48 * 1024 * 1024   # < 64 MiB physical VMEM on v7x


# ---------------------------------------------------------------------------
# pltpu.roll direction probe: pins down the rotation convention at runtime so
# the conv tap shifts are direction-safe on every chip / jax version.
# ---------------------------------------------------------------------------
_ROLL_IS_JNP = None


def _roll_probe_kernel(x_ref, o_ref):
    o_ref[...] = pltpu.roll(x_ref[...], shift=1, axis=0)


def _init_roll_convention():
    global _ROLL_IS_JNP
    if _ROLL_IS_JNP is not None:
        return
    x = jnp.arange(8 * 128, dtype=jnp.float32).reshape(8, 128)
    y = pl.pallas_call(
        _roll_probe_kernel,
        out_shape=jax.ShapeDtypeStruct((8, 128), jnp.float32))(x)
    if bool(jnp.array_equal(y, jnp.roll(x, 1, axis=0))):
        _ROLL_IS_JNP = True
    elif bool(jnp.array_equal(y, jnp.roll(x, -1, axis=0))):
        _ROLL_IS_JNP = False
    else:
        raise AssertionError("unexpected pltpu.roll semantics")


def _shift_rows(x, delta):
    """y[r] = x[(r + delta) % M] along axis 0; delta is a static Python int."""
    m = x.shape[0]
    d = delta % m
    if d == 0:
        return x
    shift = (m - d) if _ROLL_IS_JNP else d
    return pltpu.roll(x, shift=shift, axis=0)


# ---------------------------------------------------------------------------
# In-kernel implicit-GEMM 3x3 convolutions (one image per grid step).
# Activations: (H*W, C) with rows ordered (i, j) row-major.
# Weights:     (9, Cin, Cout) bf16, tap t = kh*3 + kw.
# ---------------------------------------------------------------------------
def _spatial_idx(hh, ww):
    m = hh * ww
    r = jax.lax.broadcasted_iota(jnp.int32, (m, 1), 0)
    jj = jnp.bitwise_and(r, ww - 1)            # j = r % W   (W is a power of 2)
    ii = jnp.right_shift(r, ww.bit_length() - 1)  # i = r // W
    return ii, jj


def _conv_s1(x, w_ref, hh, ww):
    """3x3, stride 1, padding 1.  x: (hh*ww, cin) f32 for one image."""
    cout = w_ref.shape[2]
    ii, jj = _spatial_idx(hh, ww)
    acc = jnp.zeros((hh * ww, cout), jnp.float32)
    for kh in range(3):
        for kw in range(3):
            dh, dw = kh - 1, kw - 1
            xt = _shift_rows(x, dh * ww + dw)
            conds = []
            if dh != 0:
                conds.append((ii + dh >= 0) & (ii + dh < hh))
            if dw != 0:
                conds.append((jj + dw >= 0) & (jj + dw < ww))
            if conds:
                m = conds[0] if len(conds) == 1 else conds[0] & conds[1]
                xt = jnp.where(m, xt, jnp.zeros_like(xt))
            acc = acc + jnp.dot(xt.astype(jnp.bfloat16), w_ref[kh * 3 + kw],
                                preferred_element_type=jnp.float32)
    return acc


def _conv_s2(xs, w_ref, ho, wo):
    """3x3, stride 2, padding 1, on a 2x2 phase-split input.
    xs[ph*2+pw]: (ho*wo, cin) f32 holding x[2i+ph, 2j+pw]."""
    cout = w_ref.shape[2]
    ii, jj = _spatial_idx(ho, wo)
    acc = jnp.zeros((ho * wo, cout), jnp.float32)
    for kh in range(3):
        for kw in range(3):
            dh, dw = kh - 1, kw - 1
            ph, di = (1, -1) if dh == -1 else (dh, 0)
            pw, dj = (1, -1) if dw == -1 else (dw, 0)
            xt = _shift_rows(xs[ph * 2 + pw], di * wo + dj)
            conds = []
            if di != 0:
                conds.append(ii + di >= 0)
            if dj != 0:
                conds.append(jj + dj >= 0)
            if conds:
                m = conds[0] if len(conds) == 1 else conds[0] & conds[1]
                xt = jnp.where(m, xt, jnp.zeros_like(xt))
            acc = acc + jnp.dot(xt.astype(jnp.bfloat16), w_ref[kh * 3 + kw],
                                preferred_element_type=jnp.float32)
    return acc


# ---------------------------------------------------------------------------
# Segment kernels (each pallas_call fuses several layers, grid = batch).
# ---------------------------------------------------------------------------
def _segA_kernel(x_ref, w1, w2, w3, w4, o_ref):
    a = _conv_s1(x_ref[0].astype(jnp.float32), w1, 32, 32)
    a = _conv_s1(a, w2, 32, 32)
    a = _conv_s1(a, w3, 32, 32)
    a = _conv_s1(a, w4, 32, 32)
    o_ref[0] = a.astype(jnp.bfloat16)


def _segB_kernel(xp_ref, w5, w6, w7, o_ref):
    xs = [xp_ref[0, p].astype(jnp.float32) for p in range(4)]
    a = _conv_s2(xs, w5, 16, 16)
    a = _conv_s1(a, w6, 16, 16)
    a = _conv_s1(a, w7, 16, 16)
    o_ref[0] = a.astype(jnp.bfloat16)


def _segC_kernel(xp_ref, w8, w9, wfc_ref, bfc_ref, o_ref):
    xs = [xp_ref[0, p].astype(jnp.float32) for p in range(4)]
    a = _conv_s2(xs, w8, 8, 8)
    a = _conv_s1(a, w9, 8, 8)                       # (64, 512) f32
    pooled = jnp.mean(a, axis=0, keepdims=True)     # AvgPool2d(8) + flatten
    logits = jnp.dot(pooled.astype(jnp.bfloat16), wfc_ref[...],
                     preferred_element_type=jnp.float32) + bfc_ref[...]
    o_ref[0] = logits                                # (1, 10) f32


def _seg_call(kernel, x, consts, out_tail, out_dtype):
    """One fused segment: grid over the batch axis, constants fully resident."""
    n = x.shape[0]

    def batch_spec(shape):
        nz = len(shape) - 1
        return pl.BlockSpec((1,) + tuple(shape[1:]), lambda i: (i,) + (0,) * nz)

    def const_spec(a):
        nd = a.ndim
        return pl.BlockSpec(a.shape, lambda i: (0,) * nd)

    return pl.pallas_call(
        kernel,
        out_shape=jax.ShapeDtypeStruct((n,) + out_tail, out_dtype),
        grid_spec=pltpu.PrefetchScalarGridSpec(
            num_scalar_prefetch=0,
            grid=(n,),
            in_specs=[batch_spec(x.shape)] + [const_spec(a) for a in consts],
            out_specs=batch_spec((n,) + out_tail),
        ),
        compiler_params=pltpu.CompilerParams(
            dimension_semantics=("parallel",),
            vmem_limit_bytes=_VMEM_LIMIT),
    )(x, *consts)


# ---------------------------------------------------------------------------
# Wrapper-level glue (cheap, activation-sized, no 9x im2col blowup).
# ---------------------------------------------------------------------------
def _phase_split(x):
    """(N, H, W, C) -> (N, 4, H//2 * W//2, C); phase p = ph*2+pw holds x[:, ph::2, pw::2]."""
    n, h, w, c = x.shape
    xp = jnp.stack([x[:, a::2, b::2, :] for a in (0, 1) for b in (0, 1)], axis=1)
    return xp.reshape(n, 4, (h // 2) * (w // 2), c)


def plainnet_forward(x_nchw, kp):
    """PlainNet forward: NCHW f32 input (N, 3, 32, 32) -> (N, 10) logits."""
    _init_roll_convention()
    n = x_nchw.shape[0]
    w = kp["w_taps"]
    x = jnp.transpose(x_nchw, (0, 2, 3, 1)).astype(jnp.bfloat16)     # NHWC
    x = x.reshape(n, 32 * 32, 3)
    x = jnp.pad(x, ((0, 0), (0, 0), (0, 128 - 3)))                   # lane-dense input
    a4 = _seg_call(_segA_kernel, x, w[0:4], (32 * 32, 128), jnp.bfloat16)
    xb = _phase_split(a4.reshape(n, 32, 32, 128))
    a7 = _seg_call(_segB_kernel, xb, w[4:7], (16 * 16, 512), jnp.bfloat16)
    xc = _phase_split(a7.reshape(n, 16, 16, 512))
    out = _seg_call(_segC_kernel, xc, w[7:9] + [kp["fc_w"], kp["fc_b"]],
                    (1, 10), jnp.float32)
    return out.reshape(n, 10)


# ---------------------------------------------------------------------------
# Parameters (f32 "PyTorch-style") + one-time kernel-layout prep (bf16).
# ---------------------------------------------------------------------------
def init_params(key):
    keys = jax.random.split(key, len(_CHANNELS) + 2)
    convs = []
    for k, (cin, cout) in zip(keys[:len(_CHANNELS)], _CHANNELS):
        std = 1.0 / jnp.sqrt(9.0 * cin)
        convs.append(jax.random.normal(k, (cout, cin, 3, 3), jnp.float32) * std)
    fc_w = jax.random.normal(keys[-2], (512, 10), jnp.float32) / jnp.sqrt(512.0)
    fc_b = jax.random.normal(keys[-1], (10,), jnp.float32) * 0.01
    return {"convs": convs, "fc_w": fc_w, "fc_b": fc_b}


def prep_params(params):
    """Precompute tap-major bf16 weight tensors once (no per-forward re-layout)."""
    taps = []
    for idx, w in enumerate(params["convs"]):
        cout, cin = w.shape[0], w.shape[1]
        t = jnp.transpose(w, (2, 3, 1, 0)).reshape(9, cin, cout)   # (tap, cin, cout)
        if idx == 0:
            t = jnp.pad(t, ((0, 0), (0, 128 - cin), (0, 0)))       # pad Cin 3 -> 128
        taps.append(t.astype(jnp.bfloat16))
    return {"w_taps": taps,
            "fc_w": params["fc_w"].astype(jnp.bfloat16),
            "fc_b": params["fc_b"].reshape(1, 10).astype(jnp.float32)}


# ---------------------------------------------------------------------------
# Pure-XLA reference mirroring the kernel's bf16-input / f32-accumulate math.
# ---------------------------------------------------------------------------
def _ref_forward(x_nchw, params):
    f32 = jnp.float32
    x = jnp.transpose(x_nchw, (0, 2, 3, 1)).astype(jnp.bfloat16).astype(f32)
    for li, (w, s) in enumerate(zip(params["convs"], _STRIDES)):
        w_hwio = jnp.transpose(w, (2, 3, 1, 0)).astype(jnp.bfloat16).astype(f32)
        x = jax.lax.conv_general_dilated(
            x, w_hwio, window_strides=(s, s), padding=((1, 1), (1, 1)),
            dimension_numbers=("NHWC", "HWIO", "NHWC"),
            precision=jax.lax.Precision.HIGHEST)
        if li != len(params["convs"]) - 1:
            x = x.astype(jnp.bfloat16).astype(f32)
    pooled = jnp.mean(x, axis=(1, 2))
    wfc = params["fc_w"].astype(jnp.bfloat16).astype(f32)
    return jnp.dot(pooled.astype(jnp.bfloat16).astype(f32), wfc,
                   precision=jax.lax.Precision.HIGHEST) + params["fc_b"][None, :]


if __name__ == "__main__":
    _init_roll_convention()
    key = jax.random.PRNGKey(0)
    pkey, xkey = jax.random.split(key)
    params = init_params(pkey)
    kparams = prep_params(params)
    # PyTorch-style NCHW input; 32x32 spatial is required by AvgPool2d(8)
    # after two stride-2 convs and by the 512-feature Linear head.
    x = jax.random.normal(xkey, (2, 3, 32, 32), jnp.float32)

    fwd = jax.jit(plainnet_forward)
    out = jax.block_until_ready(fwd(x, kparams))

    assert out.shape == (2, 10)
    assert bool(jnp.all(jnp.isfinite(out)))
    ref = _ref_forward(x, params)
    assert bool(jnp.allclose(out, ref, atol=2e-2, rtol=2e-2)), \
        f"mismatch vs reference: {float(jnp.max(jnp.abs(out - ref)))}"
    print("KERNEL_OK")
</pallas_src>

<mosaic_0001>
module attributes {stable_mosaic.version = 11 : i64} {
  func.func @_roll_probe_kernel(%arg0: memref<8x128xf32, #tpu.memory_space<vmem>>, %arg1: memref<8x128xf32, #tpu.memory_space<vmem>>) attributes {dimension_semantics = [], scalar_prefetch = 0 : i64, scratch_operands = 0 : i64, tpu.core_type = #tpu.core_type<tc>} {
    %c0 = arith.constant 0 : index
    %c0_0 = arith.constant 0 : index
    %0 = vector.load %arg0[%c0, %c0_0] : memref<8x128xf32, #tpu.memory_space<vmem>>, vector<8x128xf32>
    %c1_i32 = arith.constant 1 : i32
    %1 = tpu.dynamic_rotate %0 by %c1_i32 dim 0 : vector<8x128xf32>, i32 -> vector<8x128xf32>
    %c0_1 = arith.constant 0 : index
    %c0_2 = arith.constant 0 : index
    %2 = vector.load %arg1[%c0_1, %c0_2] : memref<8x128xf32, #tpu.memory_space<vmem>>, vector<8x128xf32>
    tpu.vector_store %arg1[%c0_1, %c0_2], %1 {strides = array<i32>} : memref<8x128xf32, #tpu.memory_space<vmem>>, vector<8x128xf32>,
    return
  }
}

</mosaic_0001>

<llo_original>
// kernel: tpu_custom_call.1
$region0: #{tpu_custom_call.1}
  #allocation0 [shape = 'u32[]', space=smem, size = 0x4, offset = 0x4, fixed_abs, tag = 'smem constant byte address 0x4 - core index']
  #allocation1 [shape = 'u32[144,128]{1,0:T(1,128)}', space=vmem, size = 0x12000, scoped, tag = 'internal scratch']
  %s0 = inlined_call_operand.hbm [shape: f32[8,128], index: 0, kind: input, shape index: {}]
  %s1 = inlined_call_operand.hbm [shape: f32[8,128], index: 1, kind: output, shape index: {}]
  %s2 = sld [smem:[#allocation0]]
  $region18: #{tpu_custom_call.1} parent=0
    _
  %s4 = ssub.s32 1, %s2
  %s5 = scalar_select 0, %s4, %s2
  $region1: #{tpu_custom_call.1} parent=0
    #allocation2 [shape = 'u8[4096]{0}', space=vmem, size = 0x1000, scoped, tag = 'input window, operand 0, single buffered']
    #allocation3 [shape = 's32[1]{0}', space=sflag, size = 0x4, scoped, tag = 'scoped memory for tpu_custom_call.1']
    #allocation4 [shape = 's32[1]{0}', space=sflag, size = 0x4, scoped, tag = 'scoped memory for tpu_custom_call.1']
    #allocation5 [shape = 'u8[4096]{0}', space=vmem, size = 0x1000, scoped, tag = 'output window, operand 0, single buffered']
    %6 = vsyncpa [#allocation3], 0
    %7 = vsyncpa [#allocation4], 0
    // Predicated region
    $region2: #{tpu_custom_call.1} parent=1 // pred_check
      _
    $region3: #{tpu_custom_call.1} parent=1 // pred_check_branch
      %9 = sbr.rel (0) target = $region5
    $region4: #{tpu_custom_call.1} parent=1 // pred_region
      %s11 = ssub.s32 128, 128
      %12 = vsyncadd [#allocation3], %s11
      %s14 = sshll.u32 [#allocation2], 4
      %s15 = int_to_ptr.vmem [resolvable:$true] %s14
      %17 = dma.hbm_to_vmem [thread:$0]  %s0, 128, %s15, [#allocation3]
    $region5: #{tpu_custom_call.1} parent=1 // pred_fallthru
      _
    // Predicated region
    $region6: #{tpu_custom_call.1} parent=1 // pred_check
      _
    $region7: #{tpu_custom_call.1} parent=1 // pred_check_branch
      %19 = sbr.rel (0) target = $region9
    $region8: #{tpu_custom_call.1} parent=1 // pred_region
      %20 = dma.done [#allocation3], 128
    $region9: #{tpu_custom_call.1} parent=1 // pred_fallthru
      _
    %v21 = vld [vmem:[#allocation2] sm:$0xff]
    %v22 = vrot.slane %v21, 7
    %23 = vst [vmem:[#allocation5] sm:$0xff] %v22
    // Predicated region
    $region10: #{tpu_custom_call.1} parent=1 // pred_check
      _
    $region11: #{tpu_custom_call.1} parent=1 // pred_check_branch
      %25 = sbr.rel (0) target = $region13
    $region12: #{tpu_custom_call.1} parent=1 // pred_region
      %s27 = ssub.s32 128, 128
      %28 = vsyncadd [#allocation4], %s27
      %s30 = sshll.u32 [#allocation5], 4
      %s31 = int_to_ptr.vmem [resolvable:$true] %s30
      %33 = dma.vmem_to_hbm [thread:$0]  %s31, 128, %s1, [#allocation4]
    $region13: #{tpu_custom_call.1} parent=1 // pred_fallthru
      _
    // Predicated region
    $region14: #{tpu_custom_call.1} parent=1 // pred_check
      _
    $region15: #{tpu_custom_call.1} parent=1 // pred_check_branch
      %35 = sbr.rel (0) target = $region17
    $region16: #{tpu_custom_call.1} parent=1 // pred_region
      %36 = dma.done [#allocation4], 128
    $region17: #{tpu_custom_call.1} parent=1 // pred_fallthru
      _
    %37 = vsyncpa [#allocation3], 1
    %38 = vsyncpa [#allocation4], 1

</llo_original>
